<compile_context>
chip_gen: v6e
topology: v6e:2x2x1
jax: 0.10.0
libtpu: 0.0.40
codegen_flags: <defaults>
</compile_context>

<pallas_src>
import functools

import jax
import jax.numpy as jnp
from jax.experimental import pallas as pl
from jax.experimental.pallas import tpu as pltpu


def _round_up(x: int, m: int) -> int:
    return (x + m - 1) // m * m


def _vmem_capacity_bytes() -> int:
    """Per-core VMEM capacity; conservative fallback (v7x per-TC) if unknown."""
    try:
        cap = int(pltpu.get_tpu_info().vmem_capacity_bytes)
        if cap > 0:
            return cap
    except Exception:
        pass
    return 64 * 1024 * 1024


def _choose_sublane_blocks(nb: int, c_in: int, c_out: int, itemsize: int):
    """Pick S = number of 128-lane sublane-blocks per tile, and padded nb.

    Returns (S, nb_pad).  S is either == nb (full-dim block, no (8,128)
    constraint) or a multiple of the sublane alignment; nb_pad - nb is kept
    small (<= ~6% of nb) so wrapper-side padding stays negligible.
    """
    align = 8 if itemsize >= 4 else 16
    per_s = (c_in + c_out) * 128 * itemsize          # in+out bytes per sublane-block
    db_budget = _vmem_capacity_bytes() // 4          # double-buffered in+out budget
    s_cap = min(db_budget // (2 * per_s), (8 << 20) // per_s)
    s_cap = max(align, (s_cap // align) * align)
    if nb <= s_cap:
        return nb, nb                                # one tile covers the whole row
    for s in range(s_cap, align - 1, -align):
        nb_pad = _round_up(nb, s)
        if nb_pad - nb <= max(nb // 16, align):      # exact divisors hit this first
            return s, nb_pad
    return align, _round_up(nb, align)               # unreachable safety net


def _out_conv_vpu_kernel(x_ref, w_ref, b_ref, o_ref, *,
                         c_in: int, c_out: int, comp_score: bool):
    """Small-channel path: unrolled broadcast-FMA on dense (S,128) tiles.

    x_ref: (1, c_in, S, 128) VMEM; w_ref: (c_out*c_in,) SMEM f32;
    b_ref: (c_out,) SMEM f32;   o_ref: (1, c_out, S, 128) VMEM.
    """
    x_ch = [x_ref[0, ci].astype(jnp.float32) for ci in range(c_in)]   # (S,128) each
    for co in range(c_out):
        acc = x_ch[0] * w_ref[co * c_in]             # scalar broadcast from SMEM
        for ci in range(1, c_in):
            acc = acc + x_ch[ci] * w_ref[co * c_in + ci]
        acc = acc + b_ref[co]
        if comp_score:
            acc = jax.nn.sigmoid(acc)
        o_ref[0, co] = acc.astype(o_ref.dtype)       # direct dense store, no concat


def _out_conv_mxu_kernel(x_ref, w_ref, b_ref, o_ref, *, comp_score: bool):
    """Large-channel path: MXU matmul; weight/bias already f32 (VMEM-resident)."""
    x = x_ref[0].astype(jnp.float32)                 # (c_in, TL)
    y = jnp.dot(w_ref[...], x, preferred_element_type=jnp.float32) + b_ref[...]
    if comp_score:
        y = jax.nn.sigmoid(y)
    o_ref[0] = y.astype(o_ref.dtype)


def out_conv(x, weight, bias, comp_score: bool):
    """x: (N, C_in, L); weight: (C_out, C_in); bias: (C_out,)."""
    n, c_in, length = x.shape
    c_out = weight.shape[0]

    # Degenerate short rows: fold batch into the length axis so lanes stay
    # dense and the pallas_call is one well-shaped step instead of N masked ones.
    if length < 128 and n > 1:
        xf = jnp.transpose(x, (1, 0, 2)).reshape(1, c_in, n * length)
        yf = out_conv(xf, weight, bias, comp_score)          # (1, c_out, n*length)
        return jnp.transpose(yf.reshape(c_out, n, length), (1, 0, 2))

    itemsize = jnp.dtype(x.dtype).itemsize
    nb = _round_up(length, 128) // 128
    s_blk, nb_pad = _choose_sublane_blocks(nb, c_in, c_out, itemsize)
    l_pad = nb_pad * 128
    if l_pad != length:                                       # only 128-rounding (+<=6%)
        x = jnp.pad(x, ((0, 0), (0, 0), (0, l_pad - length)))

    num_l_tiles = nb_pad // s_blk
    grid = (num_l_tiles, n)        # large/even axis first -> better v7x core split

    block_bytes = (c_in + c_out) * s_blk * 128 * itemsize     # one in+out block set
    vmem_limit = int(min(_vmem_capacity_bytes(),
                         max(2 * block_bytes + (8 << 20), 32 << 20)))

    use_vpu_path = (c_in <= 32) and (c_out <= 32)
    if use_vpu_path:
        # Dense 4-D layout: length -> (sublane blocks, 128 lanes).
        x_arg = x.reshape(n, c_in, nb_pad, 128)
        kernel = functools.partial(_out_conv_vpu_kernel,
                                   c_in=c_in, c_out=c_out, comp_score=comp_score)
        in_specs = [
            pl.BlockSpec((1, c_in, s_blk, 128), lambda l, b: (b, 0, l, 0)),
            pl.BlockSpec(memory_space=pltpu.MemorySpace.SMEM),
            pl.BlockSpec(memory_space=pltpu.MemorySpace.SMEM),
        ]
        out_specs = pl.BlockSpec((1, c_out, s_blk, 128), lambda l, b: (b, 0, l, 0))
        out_shape = jax.ShapeDtypeStruct((n, c_out, nb_pad, 128), x.dtype)
        args = (x_arg,
                weight.reshape(-1).astype(jnp.float32),
                bias.astype(jnp.float32))
    else:
        tl = s_blk * 128
        kernel = functools.partial(_out_conv_mxu_kernel, comp_score=comp_score)
        in_specs = [
            pl.BlockSpec((1, c_in, tl), lambda l, b: (b, 0, l)),
            pl.BlockSpec((c_out, c_in), lambda l, b: (0, 0)),
            pl.BlockSpec((c_out, 1), lambda l, b: (0, 0)),
        ]
        out_specs = pl.BlockSpec((1, c_out, tl), lambda l, b: (b, 0, l))
        out_shape = jax.ShapeDtypeStruct((n, c_out, l_pad), x.dtype)
        args = (x,
                weight.astype(jnp.float32),
                bias.reshape(c_out, 1).astype(jnp.float32))

    out = pl.pallas_call(
        kernel,
        out_shape=out_shape,
        grid_spec=pltpu.PrefetchScalarGridSpec(
            num_scalar_prefetch=0,
            grid=grid,
            in_specs=in_specs,
            out_specs=out_specs,
        ),
        compiler_params=pltpu.CompilerParams(
            dimension_semantics=("parallel", "parallel"),
            vmem_limit_bytes=vmem_limit,
        ),
    )(*args)

    out = out.reshape(n, c_out, l_pad)
    if l_pad != length:
        out = out[:, :, :length]   # drop padded lanes (incl. sigmoid(bias) junk)
    return out


def _reference(x, weight, bias, comp_score):
    y = jnp.einsum("oc,ncl->nol", weight, x) + bias[None, :, None]
    return jax.nn.sigmoid(y) if comp_score else y


if __name__ == "__main__":
    key = jax.random.PRNGKey(0)

    # --- Small shapes matching the module: batch=2, in_ch=4, out_ch=3, L=16 ---
    N, C_IN, C_OUT, L = 2, 4, 3, 16
    kx, kw, kb, kx2, kx3, kw3, kb3 = jax.random.split(key, 7)

    x = jax.random.normal(kx, (N, C_IN, L), dtype=jnp.float32)
    # PyTorch Conv1d weight is (out_ch, in_ch, 1) -> squeeze the kernel dim.
    weight = jax.random.normal(kw, (C_OUT, C_IN), dtype=jnp.float32) * 0.1
    bias = jax.random.normal(kb, (C_OUT,), dtype=jnp.float32) * 0.1

    y_sig = out_conv(x, weight, bias, comp_score=True)
    y_raw = out_conv(x, weight, bias, comp_score=False)
    jax.block_until_ready((y_sig, y_raw))
    assert y_sig.shape == (N, C_OUT, L)
    assert jnp.allclose(y_raw, _reference(x, weight, bias, False), atol=1e-5, rtol=1e-5)
    assert jnp.allclose(y_sig, _reference(x, weight, bias, True), atol=1e-5, rtol=1e-5)

    # --- VPU path with multiple 128-lane sublane blocks (no padding needed) ---
    L2 = 1280
    x2 = jax.random.normal(kx2, (N, C_IN, L2), dtype=jnp.float32)
    y2 = out_conv(x2, weight, bias, comp_score=True)
    jax.block_until_ready(y2)
    assert y2.shape == (N, C_OUT, L2)
    assert jnp.allclose(y2, _reference(x2, weight, bias, True), atol=1e-5, rtol=1e-5)

    # --- MXU path (larger channel counts) + ragged length pad/slice ---
    N3, C_IN3, C_OUT3, L3 = 2, 48, 40, 300
    x3 = jax.random.normal(kx3, (N3, C_IN3, L3), dtype=jnp.float32)
    w3 = jax.random.normal(kw3, (C_OUT3, C_IN3), dtype=jnp.float32) * 0.1
    b3 = jax.random.normal(kb3, (C_OUT3,), dtype=jnp.float32) * 0.1
    y3 = out_conv(x3, w3, b3, comp_score=True)
    jax.block_until_ready(y3)
    assert y3.shape == (N3, C_OUT3, L3)
    assert jnp.allclose(y3, _reference(x3, w3, b3, True), atol=1e-4, rtol=1e-5)

    print("KERNEL_OK")
</pallas_src>

<mosaic_0001>
module attributes {stable_mosaic.version = 11 : i64} {
  func.func @_out_conv_vpu_kernel(%arg0: i32, %arg1: i32, %arg2: memref<1x4x1x128xf32, #tpu.memory_space<vmem>>, %arg3: memref<12xf32, #tpu.memory_space<smem>>, %arg4: memref<3xf32, #tpu.memory_space<smem>>, %arg5: memref<1x3x1x128xf32, #tpu.memory_space<vmem>>) attributes {dimension_semantics = [#tpu.dimension_semantics<parallel>, #tpu.dimension_semantics<parallel>], iteration_bounds = array<i64: 1, 1>, scalar_prefetch = 0 : i64, scratch_operands = 0 : i64, tpu.core_type = #tpu.core_type<tc>, window_params = [{transform_indices = @transform_0, window_bounds = array<i64: 1, 4, 1, 128>}, {transform_indices = @transform_1, window_bounds = array<i64: 12>}, {transform_indices = @transform_2, window_bounds = array<i64: 3>}, {transform_indices = @transform_3, window_bounds = array<i64: 1, 3, 1, 128>}]} {
    %c0 = arith.constant 0 : index
    %c0_0 = arith.constant 0 : index
    %c0_1 = arith.constant 0 : index
    %c0_2 = arith.constant 0 : index
    %0 = vector.load %arg2[%c0, %c0_0, %c0_1, %c0_2] : memref<1x4x1x128xf32, #tpu.memory_space<vmem>>, vector<1x1x1x128xf32>
    %1 = vector.shape_cast %0 : vector<1x1x1x128xf32> to vector<1x128xf32>
    %c0_3 = arith.constant 0 : index
    %c1 = arith.constant 1 : index
    %c0_4 = arith.constant 0 : index
    %c0_5 = arith.constant 0 : index
    %2 = vector.load %arg2[%c0_3, %c1, %c0_4, %c0_5] : memref<1x4x1x128xf32, #tpu.memory_space<vmem>>, vector<1x1x1x128xf32>
    %3 = vector.shape_cast %2 : vector<1x1x1x128xf32> to vector<1x128xf32>
    %c0_6 = arith.constant 0 : index
    %c2 = arith.constant 2 : index
    %c0_7 = arith.constant 0 : index
    %c0_8 = arith.constant 0 : index
    %4 = vector.load %arg2[%c0_6, %c2, %c0_7, %c0_8] : memref<1x4x1x128xf32, #tpu.memory_space<vmem>>, vector<1x1x1x128xf32>
    %5 = vector.shape_cast %4 : vector<1x1x1x128xf32> to vector<1x128xf32>
    %c0_9 = arith.constant 0 : index
    %c3 = arith.constant 3 : index
    %c0_10 = arith.constant 0 : index
    %c0_11 = arith.constant 0 : index
    %6 = vector.load %arg2[%c0_9, %c3, %c0_10, %c0_11] : memref<1x4x1x128xf32, #tpu.memory_space<vmem>>, vector<1x1x1x128xf32>
    %7 = vector.shape_cast %6 : vector<1x1x1x128xf32> to vector<1x128xf32>
    %c0_12 = arith.constant 0 : index
    %8 = memref.load %arg3[%c0_12] : memref<12xf32, #tpu.memory_space<smem>>
    %9 = vector.broadcast %8 : f32 to vector<1x128xf32>
    %10 = arith.mulf %1, %9 : vector<1x128xf32>
    %c1_13 = arith.constant 1 : index
    %11 = memref.load %arg3[%c1_13] : memref<12xf32, #tpu.memory_space<smem>>
    %12 = vector.broadcast %11 : f32 to vector<1x128xf32>
    %13 = arith.mulf %3, %12 : vector<1x128xf32>
    %14 = arith.addf %10, %13 : vector<1x128xf32>
    %c2_14 = arith.constant 2 : index
    %15 = memref.load %arg3[%c2_14] : memref<12xf32, #tpu.memory_space<smem>>
    %16 = vector.broadcast %15 : f32 to vector<1x128xf32>
    %17 = arith.mulf %5, %16 : vector<1x128xf32>
    %18 = arith.addf %14, %17 : vector<1x128xf32>
    %c3_15 = arith.constant 3 : index
    %19 = memref.load %arg3[%c3_15] : memref<12xf32, #tpu.memory_space<smem>>
    %20 = vector.broadcast %19 : f32 to vector<1x128xf32>
    %21 = arith.mulf %7, %20 : vector<1x128xf32>
    %22 = arith.addf %18, %21 : vector<1x128xf32>
    %c0_16 = arith.constant 0 : index
    %23 = memref.load %arg4[%c0_16] : memref<3xf32, #tpu.memory_space<smem>>
    %24 = vector.broadcast %23 : f32 to vector<1x128xf32>
    %25 = arith.addf %22, %24 : vector<1x128xf32>
    %26 = arith.negf %25 : vector<1x128xf32>
    %27 = math.exp %26 : vector<1x128xf32>
    %cst = arith.constant 1.000000e+00 : f32
    %28 = vector.broadcast %cst : f32 to vector<1x128xf32>
    %29 = arith.addf %28, %27 : vector<1x128xf32>
    %30 = arith.divf %28, %29 : vector<1x128xf32>
    %c0_17 = arith.constant 0 : index
    %c0_18 = arith.constant 0 : index
    %c0_19 = arith.constant 0 : index
    %c0_20 = arith.constant 0 : index
    %31 = vector.load %arg5[%c0_17, %c0_18, %c0_19, %c0_20] : memref<1x3x1x128xf32, #tpu.memory_space<vmem>>, vector<1x1x1x128xf32>
    %32 = vector.shape_cast %31 : vector<1x1x1x128xf32> to vector<1x128xf32>
    %33 = vector.shape_cast %30 : vector<1x128xf32> to vector<1x1x1x128xf32>
    tpu.vector_store %arg5[%c0_17, %c0_18, %c0_19, %c0_20], %33 {strides = array<i32>} : memref<1x3x1x128xf32, #tpu.memory_space<vmem>>, vector<1x1x1x128xf32>,
    %c4 = arith.constant 4 : index
    %34 = memref.load %arg3[%c4] : memref<12xf32, #tpu.memory_space<smem>>
    %35 = vector.broadcast %34 : f32 to vector<1x128xf32>
    %36 = arith.mulf %1, %35 : vector<1x128xf32>
    %c5 = arith.constant 5 : index
    %37 = memref.load %arg3[%c5] : memref<12xf32, #tpu.memory_space<smem>>
    %38 = vector.broadcast %37 : f32 to vector<1x128xf32>
    %39 = arith.mulf %3, %38 : vector<1x128xf32>
    %40 = arith.addf %36, %39 : vector<1x128xf32>
    %c6 = arith.constant 6 : index
    %41 = memref.load %arg3[%c6] : memref<12xf32, #tpu.memory_space<smem>>
    %42 = vector.broadcast %41 : f32 to vector<1x128xf32>
    %43 = arith.mulf %5, %42 : vector<1x128xf32>
    %44 = arith.addf %40, %43 : vector<1x128xf32>
    %c7 = arith.constant 7 : index
    %45 = memref.load %arg3[%c7] : memref<12xf32, #tpu.memory_space<smem>>
    %46 = vector.broadcast %45 : f32 to vector<1x128xf32>
    %47 = arith.mulf %7, %46 : vector<1x128xf32>
    %48 = arith.addf %44, %47 : vector<1x128xf32>
    %c1_21 = arith.constant 1 : index
    %49 = memref.load %arg4[%c1_21] : memref<3xf32, #tpu.memory_space<smem>>
    %50 = vector.broadcast %49 : f32 to vector<1x128xf32>
    %51 = arith.addf %48, %50 : vector<1x128xf32>
    %52 = arith.negf %51 : vector<1x128xf32>
    %53 = math.exp %52 : vector<1x128xf32>
    %cst_22 = arith.constant 1.000000e+00 : f32
    %54 = vector.broadcast %cst_22 : f32 to vector<1x128xf32>
    %55 = arith.addf %54, %53 : vector<1x128xf32>
    %56 = arith.divf %54, %55 : vector<1x128xf32>
    %c0_23 = arith.constant 0 : index
    %c1_24 = arith.constant 1 : index
    %c0_25 = arith.constant 0 : index
    %c0_26 = arith.constant 0 : index
    %57 = vector.load %arg5[%c0_23, %c1_24, %c0_25, %c0_26] : memref<1x3x1x128xf32, #tpu.memory_space<vmem>>, vector<1x1x1x128xf32>
    %58 = vector.shape_cast %57 : vector<1x1x1x128xf32> to vector<1x128xf32>
    %59 = vector.shape_cast %56 : vector<1x128xf32> to vector<1x1x1x128xf32>
    tpu.vector_store %arg5[%c0_23, %c1_24, %c0_25, %c0_26], %59 {strides = array<i32>} : memref<1x3x1x128xf32, #tpu.memory_space<vmem>>, vector<1x1x1x128xf32>,
    %c8 = arith.constant 8 : index
    %60 = memref.load %arg3[%c8] : memref<12xf32, #tpu.memory_space<smem>>
    %61 = vector.broadcast %60 : f32 to vector<1x128xf32>
    %62 = arith.mulf %1, %61 : vector<1x128xf32>
    %c9 = arith.constant 9 : index
    %63 = memref.load %arg3[%c9] : memref<12xf32, #tpu.memory_space<smem>>
    %64 = vector.broadcast %63 : f32 to vector<1x128xf32>
    %65 = arith.mulf %3, %64 : vector<1x128xf32>
    %66 = arith.addf %62, %65 : vector<1x128xf32>
    %c10 = arith.constant 10 : index
    %67 = memref.load %arg3[%c10] : memref<12xf32, #tpu.memory_space<smem>>
    %68 = vector.broadcast %67 : f32 to vector<1x128xf32>
    %69 = arith.mulf %5, %68 : vector<1x128xf32>
    %70 = arith.addf %66, %69 : vector<1x128xf32>
    %c11 = arith.constant 11 : index
    %71 = memref.load %arg3[%c11] : memref<12xf32, #tpu.memory_space<smem>>
    %72 = vector.broadcast %71 : f32 to vector<1x128xf32>
    %73 = arith.mulf %7, %72 : vector<1x128xf32>
    %74 = arith.addf %70, %73 : vector<1x128xf32>
    %c2_27 = arith.constant 2 : index
    %75 = memref.load %arg4[%c2_27] : memref<3xf32, #tpu.memory_space<smem>>
    %76 = vector.broadcast %75 : f32 to vector<1x128xf32>
    %77 = arith.addf %74, %76 : vector<1x128xf32>
    %78 = arith.negf %77 : vector<1x128xf32>
    %79 = math.exp %78 : vector<1x128xf32>
    %cst_28 = arith.constant 1.000000e+00 : f32
    %80 = vector.broadcast %cst_28 : f32 to vector<1x128xf32>
    %81 = arith.addf %80, %79 : vector<1x128xf32>
    %82 = arith.divf %80, %81 : vector<1x128xf32>
    %c0_29 = arith.constant 0 : index
    %c2_30 = arith.constant 2 : index
    %c0_31 = arith.constant 0 : index
    %c0_32 = arith.constant 0 : index
    %83 = vector.load %arg5[%c0_29, %c2_30, %c0_31, %c0_32] : memref<1x3x1x128xf32, #tpu.memory_space<vmem>>, vector<1x1x1x128xf32>
    %84 = vector.shape_cast %83 : vector<1x1x1x128xf32> to vector<1x128xf32>
    %85 = vector.shape_cast %82 : vector<1x128xf32> to vector<1x1x1x128xf32>
    tpu.vector_store %arg5[%c0_29, %c2_30, %c0_31, %c0_32], %85 {strides = array<i32>} : memref<1x3x1x128xf32, #tpu.memory_space<vmem>>, vector<1x1x1x128xf32>,
    return
  }
  func.func @transform_0(%arg0: i32, %arg1: i32) -> (i32, i32, i32, i32) {
    %c0_i32 = arith.constant 0 : i32
    %c0_i32_0 = arith.constant 0 : i32
    %c0_i32_1 = arith.constant 0 : i32
    return %arg1, %c0_i32, %arg0, %c0_i32_0 : i32, i32, i32, i32
  }
  func.func @transform_1(%arg0: i32, %arg1: i32) -> i32 {
    %c0_i32 = arith.constant 0 : i32
    %c0_i32_0 = arith.constant 0 : i32
    return %c0_i32 : i32
  }
  func.func @transform_2(%arg0: i32, %arg1: i32) -> i32 {
    %c0_i32 = arith.constant 0 : i32
    %c0_i32_0 = arith.constant 0 : i32
    return %c0_i32 : i32
  }
  func.func @transform_3(%arg0: i32, %arg1: i32) -> (i32, i32, i32, i32) {
    %c0_i32 = arith.constant 0 : i32
    %c0_i32_0 = arith.constant 0 : i32
    %c0_i32_1 = arith.constant 0 : i32
    return %arg1, %c0_i32, %arg0, %c0_i32_0 : i32, i32, i32, i32
  }
}

</mosaic_0001>

<llo_original>
// kernel: tpu_custom_call.1
$region0: #{tpu_custom_call.1}
  #allocation0 [shape = 'u32[]', space=smem, size = 0x4, offset = 0x4, fixed_abs, tag = 'smem constant byte address 0x4 - core index']
  #allocation1 [shape = 'u32[144,128]{1,0:T(1,128)}', space=vmem, size = 0x12000, scoped, tag = 'internal scratch']
  %s0 = inlined_call_operand.hbm [shape: f32[1,4,1,128], index: 0, kind: input, shape index: {}]
  %s1 = inlined_call_operand.vmem [shape: f32[12], index: 1, kind: input, shape index: {}]
  %s2 = inlined_call_operand.vmem [shape: f32[3], index: 2, kind: input, shape index: {}]
  %s3 = inlined_call_operand.hbm [shape: f32[1,3,1,128], index: 3, kind: output, shape index: {}]
  %s4 = sld [smem:[#allocation0]]
  $region34: #{tpu_custom_call.1} parent=0
    _
  %s6 = ssub.s32 1, %s4
  %s7 = scalar_select 0, %s6, %s4
  $region1: #{tpu_custom_call.1} parent=0
    #allocation2 [shape = 'u8[2048]{0}', space=vmem, size = 0x800, scoped, tag = 'input window, operand 0, single buffered']
    #allocation3 [shape = 's32[1]{0}', space=sflag, size = 0x4, scoped, tag = 'scoped memory for tpu_custom_call.1']
    #allocation4 [shape = 's32[1]{0}', space=sflag, size = 0x4, scoped, tag = 'scoped memory for tpu_custom_call.1']
    #allocation5 [shape = 's32[1]{0}', space=sflag, size = 0x4, scoped, tag = 'scoped memory for tpu_custom_call.1']
    #allocation6 [shape = 'u8[512]{0}', space=smem, size = 0x200, scoped, tag = 'input window, operand 1, single buffered']
    #allocation7 [shape = 'u8[512]{0}', space=smem, size = 0x200, scoped, tag = 'input window, operand 2, single buffered']
    #allocation8 [shape = 's32[1]{0}', space=sflag, size = 0x4, scoped, tag = 'scoped memory for tpu_custom_call.1']
    #allocation9 [shape = 'u8[1536]{0}', space=vmem, size = 0x800, scoped, tag = 'output window, operand 0, single buffered']
    %8 = vsyncpa [#allocation3], 0
    %9 = vsyncpa [#allocation5], 0
    %10 = vsyncpa [#allocation8], 0
    %11 = vsyncpa [#allocation4], 0
    // Predicated region
    $region2: #{tpu_custom_call.1} parent=1 // pred_check
      _
    $region3: #{tpu_custom_call.1} parent=1 // pred_check_branch
      %13 = sbr.rel (0) target = $region5
    $region4: #{tpu_custom_call.1} parent=1 // pred_region
      %s15 = ssub.s32 64, 64
      %16 = vsyncadd [#allocation3], %s15
      %s17 = sshll.u32 [#allocation2], 4
      %s18 = int_to_ptr.vmem [resolvable:$true] %s17
      %23 = dma.hbm_to_vmem [thread:$0]  %s0, 64, %s18, [#allocation3], 16, 16, 1
    $region5: #{tpu_custom_call.1} parent=1 // pred_fallthru
      _
    // Predicated region
    $region6: #{tpu_custom_call.1} parent=1 // pred_check
      _
    $region7: #{tpu_custom_call.1} parent=1 // pred_check_branch
      %25 = sbr.rel (0) target = $region9
    $region8: #{tpu_custom_call.1} parent=1 // pred_region
      %s27 = ssub.s32 16, 16
      %28 = vsyncadd [#allocation5], %s27
      %s30 = sshll.u32 %s1, 4
      %s31 = int_to_ptr.vmem [resolvable:$true] %s30
      %33 = dma.vmem_to_smem %s31, 16, [#allocation6], [#allocation5]
    $region9: #{tpu_custom_call.1} parent=1 // pred_fallthru
      _
    // Predicated region
    $region10: #{tpu_custom_call.1} parent=1 // pred_check
      _
    $region11: #{tpu_custom_call.1} parent=1 // pred_check_branch
      %35 = sbr.rel (0) target = $region13
    $region12: #{tpu_custom_call.1} parent=1 // pred_region
      %s37 = ssub.s32 16, 16
      %38 = vsyncadd [#allocation8], %s37
      %s40 = sshll.u32 %s2, 4
      %s41 = int_to_ptr.vmem [resolvable:$true] %s40
      %43 = dma.vmem_to_smem %s41, 16, [#allocation7], [#allocation8]
    $region13: #{tpu_custom_call.1} parent=1 // pred_fallthru
      _
    // Predicated region
    $region14: #{tpu_custom_call.1} parent=1 // pred_check
      _
    $region15: #{tpu_custom_call.1} parent=1 // pred_check_branch
      %45 = sbr.rel (0) target = $region17
    $region16: #{tpu_custom_call.1} parent=1 // pred_region
      %46 = dma.done [#allocation3], 64
    $region17: #{tpu_custom_call.1} parent=1 // pred_fallthru
      _
    // Predicated region
    $region18: #{tpu_custom_call.1} parent=1 // pred_check
      _
    $region19: #{tpu_custom_call.1} parent=1 // pred_check_branch
      %48 = sbr.rel (0) target = $region21
    $region20: #{tpu_custom_call.1} parent=1 // pred_region
      %49 = dma.done [#allocation5], 16
    $region21: #{tpu_custom_call.1} parent=1 // pred_fallthru
      _
    // Predicated region
    $region22: #{tpu_custom_call.1} parent=1 // pred_check
      _
    $region23: #{tpu_custom_call.1} parent=1 // pred_check_branch
      %51 = sbr.rel (0) target = $region25
    $region24: #{tpu_custom_call.1} parent=1 // pred_region
      %52 = dma.done [#allocation8], 16
    $region25: #{tpu_custom_call.1} parent=1 // pred_fallthru
      _
    %53 = sfence
    %v54 = vld [vmem:[#allocation2] sm:$0x1]
    %s55 = scalar_lea.vmem [#allocation2], 1
    %v56 = vld [vmem:[%s55] sm:$0x1]
    %s57 = scalar_lea.vmem [#allocation2], 2
    %v58 = vld [vmem:[%s57] sm:$0x1]
    %s59 = scalar_lea.vmem [#allocation2], 3
    %v60 = vld [vmem:[%s59] sm:$0x1]
    %s61 = sld [smem:[#allocation6]]
    %v62 = vstv %s61
    %v63 = vmul.f32 %v54, %v62
    %s64 = sld [smem:[#allocation6 + $0x1]]
    %v65 = vstv %s64
    %v66 = vmul.f32 %v56, %v65
    %v67 = vadd.f32 %v63, %v66
    %s68 = sld [smem:[#allocation6 + $0x2]]
    %v69 = vstv %s68
    %v70 = vmul.f32 %v58, %v69
    %v71 = vadd.f32 %v67, %v70
    %s72 = sld [smem:[#allocation6 + $0x3]]
    %v73 = vstv %s72
    %v74 = vmul.f32 %v60, %v73
    %v75 = vadd.f32 %v71, %v74
    %s76 = sld [smem:[#allocation7]]
    %v77 = vstv %s76
    %v78 = vadd.f32 %v75, %v77
    %v79 = vxor.u32 %v78, 2147483648
    %v80 = vmul.f32 %v79, 1.442695
    %v81 = vpow.pop %v80
    %v82 = vadd.f32 %v81, 1.0
    %v83 = vrcp.pop %v82
    %v84 = vmul.f32 1.0, %v83
    %85 = vst [vmem:[#allocation9] sm:$0x1] %v84
    %s86 = sld [smem:[#allocation6 + $0x4]]
    %v87 = vstv %s86
    %v88 = vmul.f32 %v54, %v87
    %s89 = sld [smem:[#allocation6 + $0x5]]
    %v90 = vstv %s89
    %v91 = vmul.f32 %v56, %v90
    %v92 = vadd.f32 %v88, %v91
    %s93 = sld [smem:[#allocation6 + $0x6]]
    %v94 = vstv %s93
    %v95 = vmul.f32 %v58, %v94
    %v96 = vadd.f32 %v92, %v95
    %s97 = sld [smem:[#allocation6 + $0x7]]
    %v98 = vstv %s97
    %v99 = vmul.f32 %v60, %v98
    %v100 = vadd.f32 %v96, %v99
    %s101 = sld [smem:[#allocation7 + $0x1]]
    %v102 = vstv %s101
    %v103 = vadd.f32 %v100, %v102
    %v104 = vxor.u32 %v103, 2147483648
    %v105 = vmul.f32 %v104, 1.442695
    %v106 = vpow.pop %v105
    %v107 = vadd.f32 %v106, 1.0
    %v108 = vrcp.pop %v107
    %v109 = vmul.f32 1.0, %v108
    %s110 = scalar_lea.vmem [#allocation9], 1
    %111 = vst [vmem:[%s110] sm:$0x1] %v109
    %s112 = sld [smem:[#allocation6 + $0x8]]
    %v113 = vstv %s112
    %v114 = vmul.f32 %v54, %v113
    %s115 = sld [smem:[#allocation6 + $0x9]]
    %v116 = vstv %s115
    %v117 = vmul.f32 %v56, %v116
    %v118 = vadd.f32 %v114, %v117
    %s119 = sld [smem:[#allocation6 + $0xa]]
    %v120 = vstv %s119
    %v121 = vmul.f32 %v58, %v120
    %v122 = vadd.f32 %v118, %v121
    %s123 = sld [smem:[#allocation6 + $0xb]]
    %v124 = vstv %s123
    %v125 = vmul.f32 %v60, %v124
    %v126 = vadd.f32 %v122, %v125
    %s127 = sld [smem:[#allocation7 + $0x2]]
    %v128 = vstv %s127
    %v129 = vadd.f32 %v126, %v128
    %v130 = vxor.u32 %v129, 2147483648
    %v131 = vmul.f32 %v130, 1.442695
    %v132 = vpow.pop %v131
    %v133 = vadd.f32 %v132, 1.0
    %v134 = vrcp.pop %v133
    %v135 = vmul.f32 1.0, %v134
    %s136 = scalar_lea.vmem [#allocation9], 2
    %137 = vst [vmem:[%s136] sm:$0x1] %v135
    // Predicated region
    $region26: #{tpu_custom_call.1} parent=1 // pred_check
      _
    $region27: #{tpu_custom_call.1} parent=1 // pred_check_branch
      %139 = sbr.rel (0) target = $region29
    $region28: #{tpu_custom_call.1} parent=1 // pred_region
      %s141 = ssub.s32 48, 48
      %142 = vsyncadd [#allocation4], %s141
      %s143 = sshll.u32 [#allocation9], 4
      %s144 = int_to_ptr.vmem [resolvable:$true] %s143
      %149 = dma.vmem_to_hbm [thread:$0]  %s144, 48, %s3, [#allocation4], 16, 16, 1
    $region29: #{tpu_custom_call.1} parent=1 // pred_fallthru
      _
    // Predicated region
    $region30: #{tpu_custom_call.1} parent=1 // pred_check
      _
    $region31: #{tpu_custom_call.1} parent=1 // pred_check_branch
      %151 = sbr.rel (0) target = $region33
    $region32: #{tpu_custom_call.1} parent=1 // pred_region
      %152 = dma.done [#allocation4], 48
    $region33: #{tpu_custom_call.1} parent=1 // pred_fallthru
      _
    %153 = vsyncpa [#allocation3], 1
    %154 = vsyncpa [#allocation4], 1
    %155 = vsyncpa [#allocation5], 1
    %156 = vsyncpa [#allocation8], 1

</llo_original>
